<compile_context>
chip_gen: v7x
topology: tpu7x:2x2x1
jax: 0.10.0
libtpu: 0.0.40
codegen_flags: <defaults>
</compile_context>

<pallas_src>
import functools

import jax
import jax.numpy as jnp
import numpy as np
from jax.experimental import pallas as pl
from jax.experimental.pallas import tpu as pltpu

LANES = 128


def _round_up(v, m):
    return ((v + m - 1) // m) * m


@functools.lru_cache()
def _roll_shifts_down():
    """True iff pltpu.roll(x, shift=k, axis=-1)[l] == x[(l - k) % n] (the
    jnp.roll convention).  Resolved once per process by a tiny probe kernel so
    the folded-weight construction and the in-kernel select masks are robust
    to the rotate convention on the execution device."""
    def probe(x_ref, o_ref):
        o_ref[...] = pltpu.roll(x_ref[...], shift=1, axis=1)

    x = jnp.broadcast_to(jnp.arange(LANES, dtype=jnp.float32), (8, LANES))
    out = pl.pallas_call(
        probe, out_shape=jax.ShapeDtypeStruct((8, LANES), jnp.float32))(x)
    return bool(np.asarray(out)[0, 1] == 0.0)


def _self_interaction_kernel(xf_ref, w_ref, bf_ref, of_ref, *, input_dim,
                             roll_down):
    """xf_ref: (rows, 128) f32      -- 128//D samples per row, D features each
       w_ref : (n_slabs*128, 128) bf16 -- block-diagonal folded weight slabs
       bf_ref: (1, 128) f32         -- bias tiled over the 128//D sample slots
       of_ref: (rows, 128) f32      -- folded output (same layout as xf)."""
    D = input_dim
    half = D // 2

    # bf16 elementwise path: one cast, packed (16,128) vregs for rolls / muls.
    xb = xf_ref[...].astype(jnp.bfloat16)                     # (rows, 128)
    lane_j = jax.lax.broadcasted_iota(jnp.int32, (1, LANES), 1) % D

    # Slab 0: linear features.
    acc = jnp.dot(xb, w_ref[pl.ds(0, LANES), :],
                  preferred_element_type=jnp.float32)         # (rows, 128) f32

    # Slabs m = 1 .. D/2-1: per-sample (mod-D) roll = select of two global
    # rolls; each slab covers pair-differences m and D-m at once.
    for m in range(1, half):
        prim = pltpu.roll(xb, shift=m, axis=1)                # XLU lane rotate
        sec = pltpu.roll(xb, shift=(m - D) % LANES, axis=1)
        if roll_down:
            rolled = jnp.where(lane_j >= m, prim, sec)
        else:
            rolled = jnp.where(lane_j < D - m, prim, sec)
        acc = acc + jnp.dot(xb * rolled, w_ref[pl.ds(m * LANES, LANES), :],
                            preferred_element_type=jnp.float32)

    # Slab D/2: plain roll; redundant / cross-sample lanes carry zero weight
    # rows, so no select is needed.
    rolled = pltpu.roll(xb, shift=half, axis=1)
    acc = acc + jnp.dot(xb * rolled, w_ref[pl.ds(half * LANES, LANES), :],
                        preferred_element_type=jnp.float32)

    of_ref[...] = (acc + bf_ref[...]).astype(of_ref.dtype)


def fold_params(w, b, *, input_dim=8, roll_down=None):
    """Rearranges the nn.Linear weight (D, F) / bias (D,) into the lane-folded,
    block-diagonal slabs consumed by the kernel.  Built with JAX ops over
    static index arrays, so it is jit-traceable for learned parameters."""
    D = input_dim
    assert LANES % D == 0 and D % 2 == 0
    fold = LANES // D
    half = D // 2
    n_slabs = half + 1
    num_pairs = D * (D - 1) // 2
    F = D + num_pairs

    w = jnp.asarray(w, jnp.float32)
    b = jnp.asarray(b, jnp.float32)
    assert w.shape == (D, F) and b.shape == (D,)
    if roll_down is None:
        roll_down = _roll_shifts_down()

    # pair (i, j), i < j  ->  row index in `combined` (PyTorch loop order).
    pair_row = {}
    p = D
    for i in range(D):
        for j in range(i + 1, D):
            pair_row[(i, j)] = p
            p += 1

    # For each slab t and within-sample lane j: which `combined` row feeds it
    # (-1 = unused lane -> zero weight row).
    src = np.full((n_slabs, D), -1, np.int64)
    src[0, :] = np.arange(D)                                  # linear slab
    for m in range(1, half):
        for j in range(D):
            if roll_down:
                src[m, j] = (pair_row[(j - m, j)] if j >= m
                             else pair_row[(j, j + D - m)])
            else:
                src[m, j] = (pair_row[(j, j + m)] if j < D - m
                             else pair_row[(j + m - D, j)])
    for j in range(D):
        if roll_down:
            if j >= half:
                src[half, j] = pair_row[(j - half, j)]
        else:
            if j < half:
                src[half, j] = pair_row[(j, j + half)]

    wt = w.T                                                  # (F, D)
    blocks = wt[np.clip(src, 0, None)] * (src >= 0)[..., None]  # (n_slabs,D,D)

    # Expand block-diagonally over the `fold` sample slots per 128-lane row.
    t_i, s_i, j_i, o_i = np.meshgrid(np.arange(n_slabs), np.arange(fold),
                                     np.arange(D), np.arange(D), indexing="ij")
    rows_idx = (t_i * LANES + s_i * D + j_i).reshape(-1)
    cols_idx = (s_i * D + o_i).reshape(-1)
    vals = jnp.broadcast_to(blocks[:, None], (n_slabs, fold, D, D)).reshape(-1)
    w_big = jnp.zeros((n_slabs * LANES, LANES),
                      jnp.float32).at[rows_idx, cols_idx].set(vals)
    b_f = jnp.tile(b, fold).reshape(1, LANES)
    return w_big.astype(jnp.bfloat16), b_f.astype(jnp.float32)


def self_interaction_folded(x, w_big, b_f, *, input_dim=8, roll_down,
                            tile_b=65536):
    """x: (B, D) f32, pre-folded weights/bias from fold_params.
    Returns (B, D) f32, matching SelfInteraction.forward."""
    B, D = x.shape
    assert D == input_dim and LANES % D == 0 and D % 2 == 0
    fold = LANES // D
    n_slabs = D // 2 + 1
    assert w_big.shape == (n_slabs * LANES, LANES)
    assert b_f.shape == (1, LANES)

    # Batch tiling: 256-sample granularity (16 folded rows = one packed bf16
    # sublane tile), big tiles to amortize per-grid-step overhead; split a
    # single large tile only when both halves still carry real work so the
    # v7x megacore sharding pays for itself.
    align = 16 * fold                                        # 256 samples
    Bp_min = _round_up(B, align)
    tile = max(align, min(_round_up(tile_b, align), Bp_min))
    n_tiles = pl.cdiv(Bp_min, tile)
    if n_tiles == 1 and tile >= 2 * 8192:
        tile = _round_up(tile // 2, align)
        n_tiles = pl.cdiv(Bp_min, tile)
    Bp = n_tiles * tile
    rows = tile // fold

    xp = x.astype(jnp.float32)
    if Bp != B:
        xp = jnp.pad(xp, ((0, Bp - B), (0, 0)))   # zero rows -> bias-only, sliced off
    x_f = xp.reshape(Bp // fold, LANES)           # free, contiguous reinterpretation

    kernel = functools.partial(_self_interaction_kernel, input_dim=D,
                               roll_down=roll_down)

    out_f = pl.pallas_call(
        kernel,
        out_shape=jax.ShapeDtypeStruct((Bp // fold, LANES), jnp.float32),
        grid_spec=pltpu.PrefetchScalarGridSpec(
            num_scalar_prefetch=0,
            grid=(n_tiles,),
            in_specs=[
                pl.BlockSpec((rows, LANES), lambda i: (i, 0)),           # x tile
                pl.BlockSpec((n_slabs * LANES, LANES), lambda i: (0, 0)),  # weights
                pl.BlockSpec((1, LANES), lambda i: (0, 0)),              # bias
            ],
            out_specs=pl.BlockSpec((rows, LANES), lambda i: (i, 0)),
        ),
        compiler_params=pltpu.CompilerParams(
            dimension_semantics=("parallel",),
            vmem_limit_bytes=32 * 1024 * 1024),
    )(x_f, w_big, b_f)

    out = out_f.reshape(Bp, D)
    return out[:B] if Bp != B else out


def self_interaction(x, w, b, *, input_dim=8, tile_b=65536):
    """Convenience wrapper: fold the nn.Linear parameters, then run the kernel.
    In a real pipeline, call fold_params once and reuse the folded slabs."""
    down = _roll_shifts_down()
    w_big, b_f = fold_params(w, b, input_dim=input_dim, roll_down=down)
    return self_interaction_folded(x, w_big, b_f, input_dim=input_dim,
                                   roll_down=down, tile_b=tile_b)


def self_interaction_reference(x, w, b, *, input_dim):
    """Pure-JAX f32 transcription of the PyTorch forward (for validation)."""
    D = input_dim
    inter = []
    for i in range(D):
        for j in range(i + 1, D):
            inter.append(x[:, i] * x[:, j])
    inter = jnp.stack(inter, axis=1)
    combined = jnp.concatenate([x, inter], axis=1)
    return combined @ w.T + b


if __name__ == "__main__":
    input_dim = 8
    num_interactions = input_dim * (input_dim - 1) // 2     # 28
    feat_dim = input_dim + num_interactions                 # 36

    key = jax.random.PRNGKey(0)
    kx, kw, kb = jax.random.split(key, 3)

    # Deterministic nn.Linear-style init: U(-1/sqrt(fan_in), 1/sqrt(fan_in)).
    bound = 1.0 / np.sqrt(feat_dim)
    w = jax.random.uniform(kw, (input_dim, feat_dim), jnp.float32, -bound, bound)
    b = jax.random.uniform(kb, (input_dim,), jnp.float32, -bound, bound)

    # Small batch (2048 x 8 f32 = 64 KiB) -> single-tile path.
    batch = 2048
    x = jax.random.normal(kx, (batch, input_dim), dtype=jnp.float32)

    ref = self_interaction_reference(x, w, b, input_dim=input_dim)

    out = jax.block_until_ready(self_interaction(x, w, b, input_dim=input_dim))
    # bf16 elementwise + bf16 MXU operands (f32 accumulation) => bf16 tolerance.
    np.testing.assert_allclose(np.asarray(out), np.asarray(ref),
                               rtol=3e-2, atol=5e-2)

    # Multi-step grid path (2 tiles) to exercise the index maps / pipelining.
    out_mt = jax.block_until_ready(
        self_interaction(x, w, b, input_dim=input_dim, tile_b=1024))
    np.testing.assert_allclose(np.asarray(out_mt), np.asarray(ref),
                               rtol=3e-2, atol=5e-2)

    # Ragged / tiny batch exercises the zero-padding path.
    x_small = jax.random.normal(jax.random.PRNGKey(1), (5, input_dim), jnp.float32)
    out_s = jax.block_until_ready(self_interaction(x_small, w, b, input_dim=input_dim))
    ref_s = self_interaction_reference(x_small, w, b, input_dim=input_dim)
    np.testing.assert_allclose(np.asarray(out_s), np.asarray(ref_s),
                               rtol=3e-2, atol=5e-2)

    print("KERNEL_OK")
</pallas_src>

<mosaic_0001>
module attributes {stable_mosaic.version = 11 : i64} {
  func.func @probe(%arg0: memref<8x128xf32, #tpu.memory_space<vmem>>, %arg1: memref<8x128xf32, #tpu.memory_space<vmem>>) attributes {dimension_semantics = [], scalar_prefetch = 0 : i64, scratch_operands = 0 : i64, tpu.core_type = #tpu.core_type<tc>} {
    %c0 = arith.constant 0 : index
    %c0_0 = arith.constant 0 : index
    %0 = vector.load %arg0[%c0, %c0_0] : memref<8x128xf32, #tpu.memory_space<vmem>>, vector<8x128xf32>
    %c1_i32 = arith.constant 1 : i32
    %1 = tpu.dynamic_rotate %0 by %c1_i32 dim 1 : vector<8x128xf32>, i32 -> vector<8x128xf32>
    %c0_1 = arith.constant 0 : index
    %c0_2 = arith.constant 0 : index
    %2 = vector.load %arg1[%c0_1, %c0_2] : memref<8x128xf32, #tpu.memory_space<vmem>>, vector<8x128xf32>
    tpu.vector_store %arg1[%c0_1, %c0_2], %1 {strides = array<i32>} : memref<8x128xf32, #tpu.memory_space<vmem>>, vector<8x128xf32>,
    return
  }
}

</mosaic_0001>

<llo_original>
// kernel: tpu_custom_call.1
$region0: #{tpu_custom_call.1}
  #allocation0 [shape = 'u32[]', space=smem, size = 0x4, offset = 0x4, fixed_abs, tag = 'smem constant byte address 0x4 - core index']
  #allocation1 [shape = 'u32[144,128]{1,0:T(1,128)}', space=vmem, size = 0x12000, scoped, tag = 'internal scratch']
  %s0 = inlined_call_operand.hbm [shape: f32[8,128], index: 0, kind: input, shape index: {}]
  %s1 = inlined_call_operand.hbm [shape: f32[8,128], index: 1, kind: output, shape index: {}]
  %s2 = sld [smem:[#allocation0]]
  $region18: #{tpu_custom_call.1} parent=0
    _
  %s4 = ssub.s32 1, %s2
  %s5 = scalar_select 0, %s4, %s2
  $region1: #{tpu_custom_call.1} parent=0
    #allocation2 [shape = 'u8[4096]{0}', space=vmem, size = 0x1000, scoped, tag = 'input window, operand 0, single buffered']
    #allocation3 [shape = 's32[1]{0}', space=sflag, size = 0x4, scoped, tag = 'scoped memory for tpu_custom_call.1']
    #allocation4 [shape = 's32[1]{0}', space=sflag, size = 0x4, scoped, tag = 'scoped memory for tpu_custom_call.1']
    #allocation5 [shape = 'u8[4096]{0}', space=vmem, size = 0x1000, scoped, tag = 'output window, operand 0, single buffered']
    %6 = vsyncpa [#allocation3], 0
    %7 = vsyncpa [#allocation4], 0
    // Predicated region
    $region2: #{tpu_custom_call.1} parent=1 // pred_check
      _
    $region3: #{tpu_custom_call.1} parent=1 // pred_check_branch
      %9 = sbr.rel (0) target = $region5
    $region4: #{tpu_custom_call.1} parent=1 // pred_region
      %s11 = ssub.s32 128, 128
      %12 = vsyncadd [#allocation3], %s11
      %s14 = sshll.u32 [#allocation2], 4
      %s15 = int_to_ptr.vmem [resolvable:$true] %s14
      %17 = dma.hbm_to_vmem [thread:$0]  %s0, 128, %s15, [#allocation3]
    $region5: #{tpu_custom_call.1} parent=1 // pred_fallthru
      _
    // Predicated region
    $region6: #{tpu_custom_call.1} parent=1 // pred_check
      _
    $region7: #{tpu_custom_call.1} parent=1 // pred_check_branch
      %19 = sbr.rel (0) target = $region9
    $region8: #{tpu_custom_call.1} parent=1 // pred_region
      %20 = dma.done [#allocation3], 128
    $region9: #{tpu_custom_call.1} parent=1 // pred_fallthru
      _
    %v21 = vld [vmem:[#allocation2] sm:$0xff]
    %22 = vrot.lane.b32.xlu0 %v21, 1
    %v23 = vpop.permute.xlu0 %22
    %24 = vst [vmem:[#allocation5] sm:$0xff] %v23
    // Predicated region
    $region10: #{tpu_custom_call.1} parent=1 // pred_check
      _
    $region11: #{tpu_custom_call.1} parent=1 // pred_check_branch
      %26 = sbr.rel (0) target = $region13
    $region12: #{tpu_custom_call.1} parent=1 // pred_region
      %s28 = ssub.s32 128, 128
      %29 = vsyncadd [#allocation4], %s28
      %s31 = sshll.u32 [#allocation5], 4
      %s32 = int_to_ptr.vmem [resolvable:$true] %s31
      %34 = dma.vmem_to_hbm [thread:$0]  %s32, 128, %s1, [#allocation4]
    $region13: #{tpu_custom_call.1} parent=1 // pred_fallthru
      _
    // Predicated region
    $region14: #{tpu_custom_call.1} parent=1 // pred_check
      _
    $region15: #{tpu_custom_call.1} parent=1 // pred_check_branch
      %36 = sbr.rel (0) target = $region17
    $region16: #{tpu_custom_call.1} parent=1 // pred_region
      %37 = dma.done [#allocation4], 128
    $region17: #{tpu_custom_call.1} parent=1 // pred_fallthru
      _
    %38 = vsyncpa [#allocation3], 1
    %39 = vsyncpa [#allocation4], 1

</llo_original>
